<compile_context>
chip_gen: v7x
topology: tpu7x:2x2x1
jax: 0.10.0
libtpu: 0.0.40
codegen_flags: <defaults>
</compile_context>

<pallas_src>
import jax
import jax.numpy as jnp
from jax import lax
from jax.experimental import pallas as pl
from jax.experimental.pallas import tpu as pltpu

NUM_TAGS = 5  # self.num_entity_labels


# ----------------------------------------------------------------------------
# Pallas kernel 1: BIO tag prototypes per (B*N) relation, K shots per step,
# K-shot mean fused in-kernel (no (S,5,D) HBM round trip + XLA reduction).
# ----------------------------------------------------------------------------
def bio_proto_kernel(feat_ref, label_ref, mask_ref, out_ref):
    K, L, D = feat_ref.shape
    tag_ids = lax.broadcasted_iota(jnp.int32, (1, NUM_TAGS), 1)
    acc = jnp.zeros((NUM_TAGS, D), jnp.float32)
    for k in range(K):                           # K is small & static
        feat = feat_ref[k]                       # (L, D)
        labels = label_ref[k]                    # (L, 1) int32
        mask = mask_ref[k]                       # (L, 1) float32
        M = (labels == tag_ids).astype(jnp.float32)          # (L, 5)
        # only the "O" tag (index 0) is additionally masked (matches torch)
        M = M * jnp.where(tag_ids == 0, mask, 1.0)
        # contract on axis 0 directly (avoids an explicit (L,5)->(5,L) transpose)
        sums = lax.dot_general(M, feat, (((0,), (0,)), ((), ())),
                               preferred_element_type=jnp.float32)   # (5, D)
        counts = jnp.sum(M, axis=0, keepdims=True).T                 # (5, 1)
        safe = jnp.where(counts > 0, counts, 1.0)
        acc = acc + jnp.where(counts > 0, sums / safe, 0.0)
    out_ref[0] = acc * (1.0 / K)


def cal_bio_pallas(feat, labels, mask, B, N, K):
    S, L, D = feat.shape
    out = pl.pallas_call(
        bio_proto_kernel,
        out_shape=jax.ShapeDtypeStruct((B * N, NUM_TAGS, D), jnp.float32),
        grid_spec=pltpu.PrefetchScalarGridSpec(
            num_scalar_prefetch=0,
            grid=(B * N,),
            in_specs=[
                pl.BlockSpec((K, L, D), lambda i: (i, 0, 0)),
                pl.BlockSpec((K, L, 1), lambda i: (i, 0, 0)),
                pl.BlockSpec((K, L, 1), lambda i: (i, 0, 0)),
            ],
            out_specs=pl.BlockSpec((1, NUM_TAGS, D), lambda i: (i, 0, 0)),
        ),
        compiler_params=pltpu.CompilerParams(dimension_semantics=("parallel",)),
    )(feat, labels, mask)
    return out.reshape(B, N, NUM_TAGS, D)


# ----------------------------------------------------------------------------
# Pallas kernel 2: per-query step, ALL N relations at once — CoAttention +
# split-weight projection + local aggregation + relation MLP.
# ----------------------------------------------------------------------------
def relation_kernel(sup_ref, qry_ref, qmask_ref,
                    wp_ref, bp_ref, w1_ref, b1_ref, w2_ref, b2_ref,
                    logit_ref, es_ref, eq_ref):
    _, Lq, D = qry_ref.shape
    N = sup_ref.shape[1] // NUM_TAGS

    S = sup_ref[0]          # (N*5, D)  BIO prototypes, all N relations
    Qy = qry_ref[0]         # (Lq, D)   query token embeddings
    qm = qmask_ref[0]       # (Lq, 1)   query mask (float)

    # split the (4D, D) weights into four (D, D) row blocks (no fuse/concat)
    wp0 = wp_ref[0:D, :]; wp1 = wp_ref[D:2 * D, :]
    wp2 = wp_ref[2 * D:3 * D, :]; wp3 = wp_ref[3 * D:4 * D, :]
    bp = bp_ref[...]
    w10 = w1_ref[0:D, :]; w11 = w1_ref[D:2 * D, :]
    w12 = w1_ref[2 * D:3 * D, :]; w13 = w1_ref[3 * D:4 * D, :]
    b1 = b1_ref[...]
    w2 = w2_ref[...]
    b2 = b2_ref[...]

    # CoAttention scores for all N relations at once (support_mask is all-ones)
    att = lax.dot_general(S, Qy, (((1,), (1,)), ((), ())),
                          preferred_element_type=jnp.float32)         # (N*5, Lq)
    att = att + qm.T * 100.0

    # support -> query attention: softmax over query tokens, batched over N
    m_s = jnp.max(att, axis=-1, keepdims=True)
    e_s = jnp.exp(att - m_s)
    S_ = jnp.dot(e_s / jnp.sum(e_s, axis=-1, keepdims=True), Qy,
                 preferred_element_type=jnp.float32)                  # (N*5, D)

    # proj(fuse(S, S_)) as four split-weight matmuls with M = N*5
    es_p = jnp.dot(S, wp0, preferred_element_type=jnp.float32)
    es_p = es_p + jnp.dot(S_, wp1, preferred_element_type=jnp.float32)
    es_p = es_p + jnp.dot(jnp.abs(S - S_), wp2, preferred_element_type=jnp.float32)
    es_p = es_p + jnp.dot(S * S_, wp3, preferred_element_type=jnp.float32)
    es_p = jnp.maximum(es_p + bp, 0.0)                                # (N*5, D)
    es_ref[0] = es_p

    q_wp0 = jnp.dot(Qy, wp0, preferred_element_type=jnp.float32)      # shared over N
    inv_qsum = 1.0 / jnp.sum(qm)

    max_q, mean_q, max_s, mean_s = [], [], [], []
    for n in range(N):                                                # N small & static
        lo, hi = n * NUM_TAGS, (n + 1) * NUM_TAGS
        att_n = att[lo:hi, :]                                         # (5, Lq)
        S_n = S[lo:hi, :]
        es_p_n = es_p[lo:hi, :]
        # query -> support attention: softmax over the 5 tags of THIS relation
        m_q = jnp.max(att_n, axis=0, keepdims=True)
        e_q = jnp.exp(att_n - m_q)
        Pq = e_q / jnp.sum(e_q, axis=0, keepdims=True)                # (5, Lq)
        Q_n = lax.dot_general(Pq, S_n, (((0,), (0,)), ((), ())),
                              preferred_element_type=jnp.float32) * qm   # (Lq, D)

        # proj(fuse(Qy, Q_n)) with the Qy@wp0 term hoisted out of the loop
        eq_p = q_wp0 + jnp.dot(Q_n, wp1, preferred_element_type=jnp.float32)
        eq_p = eq_p + jnp.dot(jnp.abs(Qy - Q_n), wp2, preferred_element_type=jnp.float32)
        eq_p = eq_p + jnp.dot(Qy * Q_n, wp3, preferred_element_type=jnp.float32)
        eq_p = jnp.maximum(eq_p + bp, 0.0)                            # (Lq, D)
        eq_ref[0, pl.ds(n * Lq, Lq), :] = eq_p

        # local_aggregation (the K-view/reshape in the torch code is a no-op per pair)
        max_q.append(jnp.max(eq_p, axis=0, keepdims=True))
        mean_q.append(jnp.sum(eq_p, axis=0, keepdims=True) * inv_qsum)
        max_s.append(jnp.max(es_p_n, axis=0, keepdims=True))
        mean_s.append(jnp.sum(es_p_n, axis=0, keepdims=True) * (1.0 / NUM_TAGS))

    MQ = jnp.concatenate(max_q, axis=0)        # (N, D)
    AQ = jnp.concatenate(mean_q, axis=0)
    MS = jnp.concatenate(max_s, axis=0)
    AS = jnp.concatenate(mean_s, axis=0)

    # relation MLP with split first layer; cat order [max_q, mean_q, max_s, mean_s]
    h = jnp.dot(MQ, w10, preferred_element_type=jnp.float32)
    h = h + jnp.dot(AQ, w11, preferred_element_type=jnp.float32)
    h = h + jnp.dot(MS, w12, preferred_element_type=jnp.float32)
    h = h + jnp.dot(AS, w13, preferred_element_type=jnp.float32)
    h = jnp.maximum(h + b1, 0.0)                                      # (N, D)
    # produce a lane-dense (1, N) logit row directly (w2^T @ h^T), no transpose
    logits = lax.dot_general(w2, h, (((0,), (1,)), ((), ())),
                             preferred_element_type=jnp.float32) + b2
    logit_ref[0] = logits


def forward_relation_pallas(support_bio, query_tok, query_mask_f, params, B, N, K, Q):
    NQ = N * Q
    BNQ = B * NQ
    Lq, D = query_tok.shape[1], query_tok.shape[2]
    fourD = 4 * D
    sup_flat = support_bio.reshape(B, N * NUM_TAGS, D)
    qmask3 = query_mask_f[:, :, None]                                  # (BNQ, Lq, 1)

    sup_map = lambda b, q: (b, 0, 0)
    qry_map = lambda b, q: (b * NQ + q, 0, 0)
    w_map = lambda b, q: (0, 0)

    # TODO(synk): invariant weights are still double-buffered by the default
    # pipeline (pl.Buffered(1) single-buffering not applied); vmem_limit_bytes
    # is raised instead so realistic D fits the scoped VMEM budget.
    logits, es, eq = pl.pallas_call(
        relation_kernel,
        out_shape=(
            jax.ShapeDtypeStruct((BNQ, 1, N), jnp.float32),
            jax.ShapeDtypeStruct((BNQ, N * NUM_TAGS, D), jnp.float32),
            jax.ShapeDtypeStruct((BNQ, N * Lq, D), jnp.float32),
        ),
        grid_spec=pltpu.PrefetchScalarGridSpec(
            num_scalar_prefetch=0,
            grid=(B, NQ),
            in_specs=[
                pl.BlockSpec((1, N * NUM_TAGS, D), sup_map),
                pl.BlockSpec((1, Lq, D), qry_map),
                pl.BlockSpec((1, Lq, 1), qry_map),
                pl.BlockSpec((fourD, D), w_map),
                pl.BlockSpec((1, D), w_map),
                pl.BlockSpec((fourD, D), w_map),
                pl.BlockSpec((1, D), w_map),
                pl.BlockSpec((D, 1), w_map),
                pl.BlockSpec((1, 1), w_map),
            ],
            out_specs=[
                pl.BlockSpec((1, 1, N), qry_map),
                pl.BlockSpec((1, N * NUM_TAGS, D), qry_map),
                pl.BlockSpec((1, N * Lq, D), qry_map),
            ],
        ),
        compiler_params=pltpu.CompilerParams(
            dimension_semantics=("parallel", "parallel"),
            vmem_limit_bytes=64 * 1024 * 1024),
    )(sup_flat, query_tok, qmask3,
      params['proj_w'], params['proj_b'],
      params['mlr_w1'], params['mlr_b1'], params['mlr_w2'], params['mlr_b2'])

    query_rel_logits = logits.reshape(BNQ, N)
    rel_predict = jnp.argmax(query_rel_logits, axis=1)
    match_support = es.reshape(BNQ, N, NUM_TAGS, D)
    match_query = eq.reshape(BNQ, N, Lq, D)
    return rel_predict, query_rel_logits, match_support, match_query


# ----------------------------------------------------------------------------
# Pallas kernel 3: entity emission logits  -||[proto_enh,proto_raw] - [tok_enh,tok_raw]||_2
# Relation selection via scalar-prefetch data-dependent index_maps; the raw-
# feature concat is folded in as sqrt(d2_enh + d2_raw); distances use the
# ||q||^2 + ||p||^2 - 2 q p^T MXU formulation.
# ----------------------------------------------------------------------------
def entity_logits_kernel(rel_ref, sup_e_ref, qry_e_ref, sup_r_ref, qry_r_ref, out_ref):
    del rel_ref  # only used in the index_maps
    pe = sup_e_ref[0, 0]   # (5, D)  enhanced prototypes (rel-selected)
    qe = qry_e_ref[0, 0]   # (Lq, D) enhanced query tokens (rel-selected)
    pr = sup_r_ref[0, 0]   # (5, D)  raw BIO prototypes (rel-selected)
    qr = qry_r_ref[0]      # (Lq, D) raw query tokens

    def sq_dists(q, p):
        cross = lax.dot_general(q, p, (((1,), (1,)), ((), ())),
                                preferred_element_type=jnp.float32)      # (Lq, 5)
        q_sq = jnp.sum(q * q, axis=-1, keepdims=True)                    # (Lq, 1)
        p_sq = lax.dot_general(jnp.ones((1, q.shape[-1]), jnp.float32), p * p,
                               (((1,), (1,)), ((), ())),
                               preferred_element_type=jnp.float32)       # (1, 5)
        return q_sq + p_sq - 2.0 * cross

    d2 = sq_dists(qe, pe) + sq_dists(qr, pr)
    out_ref[0] = -jnp.sqrt(jnp.maximum(d2, 0.0))


def forward_entity_pallas(match_support, match_query, support_bio, query_tok, rel_sel, NQ):
    BNQ, N, _, D = match_support.shape
    Lq = match_query.shape[2]
    return pl.pallas_call(
        entity_logits_kernel,
        out_shape=jax.ShapeDtypeStruct((BNQ, Lq, NUM_TAGS), jnp.float32),
        grid_spec=pltpu.PrefetchScalarGridSpec(
            num_scalar_prefetch=1,
            grid=(BNQ,),
            in_specs=[
                pl.BlockSpec((1, 1, NUM_TAGS, D), lambda i, rel: (i, rel[i], 0, 0)),
                pl.BlockSpec((1, 1, Lq, D), lambda i, rel: (i, rel[i], 0, 0)),
                pl.BlockSpec((1, 1, NUM_TAGS, D), lambda i, rel: (i // NQ, rel[i], 0, 0)),
                pl.BlockSpec((1, Lq, D), lambda i, rel: (i, 0, 0)),
            ],
            out_specs=pl.BlockSpec((1, Lq, NUM_TAGS), lambda i, rel: (i, 0, 0)),
        ),
        compiler_params=pltpu.CompilerParams(
            dimension_semantics=("parallel",),
            vmem_limit_bytes=64 * 1024 * 1024),
    )(rel_sel.astype(jnp.int32), match_support, match_query, support_bio, query_tok)


# ----------------------------------------------------------------------------
# Plain-JAX glue: context encoder, CRF, losses
# ----------------------------------------------------------------------------
def context_encoder(inp, emb_table, entity_label=None):
    mask_f = (inp['mask'] != 0).astype(jnp.float32)
    max_len = int(jnp.max(jnp.sum(mask_f, axis=1)))   # matches torch .item()
    mask_b = (inp['mask'] != 0)[:, :max_len]
    # TODO(synk): original uses a BERT encoder (embedding.Embedding + tokenizer);
    # replaced by a deterministic embedding-table lookup + masked-mean sentence emb.
    emb = emb_table[inp['word']]                                  # (S, L, D)
    sent_emb = jnp.sum(emb * mask_f[:, :, None], axis=1) / jnp.maximum(
        jnp.sum(mask_f, axis=1, keepdims=True), 1.0)
    emb_ = emb[:, :max_len, :]
    if entity_label is not None:
        entity_label = entity_label[:, :max_len, :]
    # TODO(synk): nn.Dropout(0.2) skipped (identity) for deterministic execution.
    emb_ = emb_ * mask_b[:, :, None].astype(emb_.dtype)
    return emb_, sent_emb, mask_b, entity_label, max_len


def crf_loss(emissions, tags, mask, start_t, end_t, trans):
    # TODO(synk): torchcrf forward kept in plain JAX (sequential recurrence).
    B, L, T = emissions.shape
    maskf = mask.astype(jnp.float32)
    bidx = jnp.arange(B)
    score = start_t[tags[:, 0]] + emissions[bidx, 0, tags[:, 0]]
    for i in range(1, L):
        step = trans[tags[:, i - 1], tags[:, i]] + emissions[bidx, i, tags[:, i]]
        score = score + step * maskf[:, i]
    seq_ends = jnp.sum(mask.astype(jnp.int32), axis=1) - 1
    score = score + end_t[tags[bidx, seq_ends]]
    numerator = score
    alpha = start_t[None, :] + emissions[:, 0]
    for i in range(1, L):
        nxt = jax.scipy.special.logsumexp(
            alpha[:, :, None] + trans[None, :, :] + emissions[:, i][:, None, :], axis=1)
        alpha = jnp.where(mask[:, i][:, None], nxt, alpha)
    alpha = alpha + end_t[None, :]
    denominator = jax.scipy.special.logsumexp(alpha, axis=1)
    return -jnp.mean(numerator - denominator)


def crf_decode(emissions, mask, start_t, end_t, trans):
    # TODO(synk): CRF Viterbi decode kept in plain JAX (sequential recurrence).
    B, L, T = emissions.shape
    bidx = jnp.arange(B)
    score = start_t[None, :] + emissions[:, 0]
    history = []
    for i in range(1, L):
        bc = score[:, :, None] + trans[None, :, :] + emissions[:, i][:, None, :]
        nxt = jnp.max(bc, axis=1)
        idx = jnp.argmax(bc, axis=1)
        score = jnp.where(mask[:, i][:, None], nxt, score)
        history.append(idx)
    score = score + end_t[None, :]
    seq_ends = jnp.sum(mask.astype(jnp.int32), axis=1) - 1
    cur = jnp.argmax(score, axis=1)
    tags = jnp.zeros((B, L), jnp.int32)
    for t in range(L - 1, -1, -1):
        tag_t = jnp.where(t <= seq_ends, cur, 0).astype(jnp.int32)
        tags = tags.at[:, t].set(tag_t)
        if t >= 1:
            prev = history[t - 1][bidx, cur]
            cur = jnp.where(t <= seq_ends, prev, cur)
    return tags


def mgfrte_forward(params, support, query, N, K, Q,
                   support_entity_label, query_entity_label, query_rel_label,
                   is_train=True):
    sup_tok, _, sup_mask, sup_ent_label, _ = context_encoder(
        support, params['emb'], support_entity_label)
    qry_tok, _, qry_mask, qry_ent_label, qry_len = context_encoder(
        query, params['emb'], query_entity_label)
    B = support['word'].shape[0] // (N * K)
    NQ = N * Q
    BNQ = B * NQ
    Lq = qry_len
    D = qry_tok.shape[-1]

    # cal_bio — support BIO prototypes (Pallas kernel 1, K-mean fused)
    sup_labels_idx = jnp.argmax(sup_ent_label, axis=-1).astype(jnp.int32)[:, :, None]
    sup_mask_f = sup_mask.astype(jnp.float32)[:, :, None]
    support_bio = cal_bio_pallas(sup_tok, sup_labels_idx, sup_mask_f, B, N, K)  # (B,N,5,D)

    # forward_relation (Pallas kernel 2, all N relations per step)
    qmask_f = qry_mask.astype(jnp.float32)
    rel_predict, query_rel_logits, match_support, match_query = forward_relation_pallas(
        support_bio, qry_tok, qmask_f, params, B, N, K, Q)

    rel_label = jnp.argmax(query_rel_label, axis=-1).reshape(BNQ)
    logz = jax.scipy.special.logsumexp(query_rel_logits, axis=1)
    loss_relation = jnp.mean(logz - query_rel_logits[jnp.arange(BNQ), rel_label])

    # forward_entity (Pallas kernel 3). The torch concat of raw features onto the
    # enhanced features is folded into the kernel as sqrt(d2_enhanced + d2_raw),
    # avoiding the broadcast (BNQ,N,Lq,2D) HBM materialization entirely.
    rel_sel = rel_label if is_train else rel_predict
    match_entity_logits = forward_entity_pallas(
        match_support, match_query, support_bio, qry_tok, rel_sel, NQ)

    entity_label = jnp.argmax(qry_ent_label, axis=-1)                  # (BNQ, Lq)
    if is_train:
        loss_entity = crf_loss(match_entity_logits, entity_label, qry_mask,
                               params['crf_start'], params['crf_end'], params['crf_trans'])
    else:
        loss_entity = None
    entity_predict = crf_decode(match_entity_logits, qry_mask,
                                params['crf_start'], params['crf_end'], params['crf_trans'])
    if is_train:
        relation_loss, entity_loss = loss_relation, loss_entity
    else:
        relation_loss, entity_loss = None, None
    return entity_predict, entity_label, entity_loss, rel_predict, rel_label, relation_loss


def init_params(key, vocab, D):
    ks = jax.random.split(key, 8)
    fourD = 4 * D
    return {
        'emb': jax.random.normal(ks[0], (vocab, D), jnp.float32) * 0.02,
        'proj_w': jax.random.normal(ks[1], (fourD, D), jnp.float32) / jnp.sqrt(fourD),
        'proj_b': jnp.zeros((1, D), jnp.float32),
        'mlr_w1': jax.random.normal(ks[2], (fourD, D), jnp.float32) / jnp.sqrt(fourD),
        'mlr_b1': jnp.zeros((1, D), jnp.float32),
        'mlr_w2': jax.random.normal(ks[3], (D, 1), jnp.float32) / jnp.sqrt(D),
        'mlr_b2': jnp.zeros((1, 1), jnp.float32),
        'crf_start': jax.random.uniform(ks[4], (NUM_TAGS,), jnp.float32, -0.1, 0.1),
        'crf_end': jax.random.uniform(ks[5], (NUM_TAGS,), jnp.float32, -0.1, 0.1),
        'crf_trans': jax.random.uniform(ks[6], (NUM_TAGS, NUM_TAGS), jnp.float32, -0.1, 0.1),
    }


if __name__ == "__main__":
    key = jax.random.PRNGKey(0)
    N, K, Q, B = 2, 1, 1, 1       # few-shot episode sizes
    L = 8                         # max_length (all masks full)
    D = 32                        # word_embedding_dim (4*D = 128 on the lane axis)
    vocab = 50

    k1, k2, k3, k4, k5, kp = jax.random.split(key, 6)
    params = init_params(kp, vocab, D)
    n_sup, n_qry = B * N * K, B * N * Q

    support = {
        'word': jax.random.randint(k1, (n_sup, L), 0, vocab),
        'mask': jnp.ones((n_sup, L), jnp.int32),
    }
    query = {
        'word': jax.random.randint(k2, (n_qry, L), 0, vocab),
        'mask': jnp.ones((n_qry, L), jnp.int32),
    }
    support_entity_label = jax.nn.one_hot(
        jax.random.randint(k3, (n_sup, L), 0, NUM_TAGS), NUM_TAGS, dtype=jnp.float32)
    query_entity_label = jax.nn.one_hot(
        jax.random.randint(k4, (n_qry, L), 0, NUM_TAGS), NUM_TAGS, dtype=jnp.float32)
    query_rel_label = jax.nn.one_hot(
        jax.random.randint(k5, (n_qry,), 0, N), N, dtype=jnp.float32)

    outs = mgfrte_forward(params, support, query, N, K, Q,
                          support_entity_label, query_entity_label, query_rel_label,
                          is_train=True)
    for o in outs:
        if o is not None:
            jax.block_until_ready(o)
    print("KERNEL_OK")
</pallas_src>

<mosaic_0001>
module attributes {stable_mosaic.version = 11 : i64} {
  func.func @bio_proto_kernel(%arg0: i32, %arg1: memref<1x8x32xf32, #tpu.memory_space<vmem>>, %arg2: memref<1x8x1xi32, #tpu.memory_space<vmem>>, %arg3: memref<1x8x1xf32, #tpu.memory_space<vmem>>, %arg4: memref<1x5x32xf32, #tpu.memory_space<vmem>>) attributes {dimension_semantics = [#tpu.dimension_semantics<parallel>], iteration_bounds = array<i64: 2>, scalar_prefetch = 0 : i64, scratch_operands = 0 : i64, tpu.core_type = #tpu.core_type<tc>, window_params = [{transform_indices = @transform_0, window_bounds = array<i64: 1, 8, 32>}, {transform_indices = @transform_1, window_bounds = array<i64: 1, 8, 1>}, {transform_indices = @transform_2, window_bounds = array<i64: 1, 8, 1>}, {transform_indices = @transform_3, window_bounds = array<i64: 1, 5, 32>}]} {
    %0 = tpu.iota {dimensions = array<i32: 1>} : vector<1x5xi32>
    %cst = arith.constant 0.000000e+00 : f32
    %1 = vector.broadcast %cst : f32 to vector<5x32xf32>
    %c0 = arith.constant 0 : index
    %c0_0 = arith.constant 0 : index
    %c0_1 = arith.constant 0 : index
    %2 = vector.load %arg1[%c0, %c0_0, %c0_1] : memref<1x8x32xf32, #tpu.memory_space<vmem>>, vector<1x8x32xf32>
    %3 = vector.shape_cast %2 : vector<1x8x32xf32> to vector<8x32xf32>
    %c0_2 = arith.constant 0 : index
    %c0_3 = arith.constant 0 : index
    %c0_4 = arith.constant 0 : index
    %4 = vector.load %arg2[%c0_2, %c0_3, %c0_4] : memref<1x8x1xi32, #tpu.memory_space<vmem>>, vector<1x8x1xi32>
    %5 = vector.shape_cast %4 : vector<1x8x1xi32> to vector<8x1xi32>
    %c0_5 = arith.constant 0 : index
    %c0_6 = arith.constant 0 : index
    %c0_7 = arith.constant 0 : index
    %6 = vector.load %arg3[%c0_5, %c0_6, %c0_7] : memref<1x8x1xf32, #tpu.memory_space<vmem>>, vector<1x8x1xf32>
    %7 = vector.shape_cast %6 : vector<1x8x1xf32> to vector<8x1xf32>
    %8 = vector.broadcast %5 : vector<8x1xi32> to vector<8x5xi32>
    %9 = vector.broadcast %0 : vector<1x5xi32> to vector<8x5xi32>
    %10 = arith.cmpi eq, %8, %9 : vector<8x5xi32>
    %11 = arith.extui %10 : vector<8x5xi1> to vector<8x5xi32>
    %12 = arith.sitofp %11 : vector<8x5xi32> to vector<8x5xf32>
    %c0_i32 = arith.constant 0 : i32
    %13 = vector.broadcast %c0_i32 : i32 to vector<1x5xi32>
    %14 = arith.cmpi eq, %0, %13 : vector<1x5xi32>
    %cst_8 = arith.constant 1.000000e+00 : f32
    %15 = vector.shape_cast %14 : vector<1x5xi1> to vector<1x5xi1>
    %16 = vector.broadcast %15 : vector<1x5xi1> to vector<8x5xi1>
    %17 = vector.shape_cast %7 : vector<8x1xf32> to vector<8x1xf32>
    %18 = vector.broadcast %17 : vector<8x1xf32> to vector<8x5xf32>
    %19 = vector.broadcast %cst_8 : f32 to vector<8x5xf32>
    %20 = arith.select %16, %18, %19 : vector<8x5xi1>, vector<8x5xf32>
    %21 = arith.mulf %12, %20 : vector<8x5xf32>
    %cst_9 = arith.constant dense<0.000000e+00> : vector<5x32xf32>
    %22 = tpu.matmul %21, %3, %cst_9 {dimension_numbers = #tpu.dot_dimension_numbers<[0], [0], [1], [1], [0, 1, 1, 1], [], []>} : vector<8x5xf32>, vector<8x32xf32>, vector<5x32xf32> -> vector<5x32xf32>
    %cst_10 = arith.constant dense<0.000000e+00> : vector<5xf32>
    %23 = vector.multi_reduction <add>, %21, %cst_10 [0] : vector<8x5xf32> to vector<5xf32>
    %24 = vector.shape_cast %23 : vector<5xf32> to vector<1x5xf32>
    %25 = tpu.transpose %24, [1, 0] : vector<1x5xf32> -> vector<5x1xf32>
    %cst_11 = arith.constant 0.000000e+00 : f32
    %26 = vector.broadcast %cst_11 : f32 to vector<5x1xf32>
    %27 = arith.cmpf ogt, %25, %26 : vector<5x1xf32>
    %cst_12 = arith.constant 1.000000e+00 : f32
    %28 = vector.broadcast %cst_12 : f32 to vector<5x1xf32>
    %29 = arith.select %27, %25, %28 : vector<5x1xi1>, vector<5x1xf32>
    %cst_13 = arith.constant 0.000000e+00 : f32
    %30 = vector.broadcast %cst_13 : f32 to vector<5x1xf32>
    %31 = arith.cmpf ogt, %25, %30 : vector<5x1xf32>
    %32 = vector.broadcast %29 : vector<5x1xf32> to vector<5x32xf32>
    %33 = arith.divf %22, %32 : vector<5x32xf32>
    %cst_14 = arith.constant 0.000000e+00 : f32
    %34 = vector.shape_cast %31 : vector<5x1xi1> to vector<5x1xi1>
    %35 = vector.broadcast %34 : vector<5x1xi1> to vector<5x32xi1>
    %36 = vector.broadcast %cst_14 : f32 to vector<5x32xf32>
    %37 = arith.select %35, %33, %36 : vector<5x32xi1>, vector<5x32xf32>
    %38 = arith.addf %1, %37 : vector<5x32xf32>
    %cst_15 = arith.constant 1.000000e+00 : f32
    %39 = vector.broadcast %cst_15 : f32 to vector<5x32xf32>
    %40 = arith.mulf %38, %39 : vector<5x32xf32>
    %c0_16 = arith.constant 0 : index
    %c0_17 = arith.constant 0 : index
    %c0_18 = arith.constant 0 : index
    %41 = vector.load %arg4[%c0_16, %c0_17, %c0_18] : memref<1x5x32xf32, #tpu.memory_space<vmem>>, vector<1x5x32xf32>
    %42 = vector.shape_cast %41 : vector<1x5x32xf32> to vector<5x32xf32>
    %43 = vector.shape_cast %40 : vector<5x32xf32> to vector<1x5x32xf32>
    tpu.vector_store %arg4[%c0_16, %c0_17, %c0_18], %43 {strides = array<i32>} : memref<1x5x32xf32, #tpu.memory_space<vmem>>, vector<1x5x32xf32>,
    return
  }
  func.func @transform_0(%arg0: i32) -> (i32, i32, i32) {
    %c0_i32 = arith.constant 0 : i32
    %c0_i32_0 = arith.constant 0 : i32
    %c0_i32_1 = arith.constant 0 : i32
    return %arg0, %c0_i32, %c0_i32_0 : i32, i32, i32
  }
  func.func @transform_1(%arg0: i32) -> (i32, i32, i32) {
    %c0_i32 = arith.constant 0 : i32
    %c0_i32_0 = arith.constant 0 : i32
    %c0_i32_1 = arith.constant 0 : i32
    return %arg0, %c0_i32, %c0_i32_0 : i32, i32, i32
  }
  func.func @transform_2(%arg0: i32) -> (i32, i32, i32) {
    %c0_i32 = arith.constant 0 : i32
    %c0_i32_0 = arith.constant 0 : i32
    %c0_i32_1 = arith.constant 0 : i32
    return %arg0, %c0_i32, %c0_i32_0 : i32, i32, i32
  }
  func.func @transform_3(%arg0: i32) -> (i32, i32, i32) {
    %c0_i32 = arith.constant 0 : i32
    %c0_i32_0 = arith.constant 0 : i32
    %c0_i32_1 = arith.constant 0 : i32
    return %arg0, %c0_i32, %c0_i32_0 : i32, i32, i32
  }
}

</mosaic_0001>

<llo_original>
// kernel: tpu_custom_call.1
$region0: #{tpu_custom_call.1}
  #allocation0 [shape = 'u32[]', space=smem, size = 0x4, offset = 0x4, fixed_abs, tag = 'smem constant byte address 0x4 - core index']
  #allocation1 [shape = 'u32[144,128]{1,0:T(1,128)}', space=vmem, size = 0x12000, scoped, tag = 'internal scratch']
  %s0 = inlined_call_operand.vmem [shape: f32[2,8,32], index: 0, kind: input, shape index: {}]
  %s1 = inlined_call_operand.vmem [shape: s32[2,8,1], index: 1, kind: input, shape index: {}]
  %s2 = inlined_call_operand.vmem [shape: f32[2,8,1], index: 2, kind: input, shape index: {}]
  %s3 = inlined_call_operand.vmem [shape: f32[2,5,32], index: 3, kind: output, shape index: {}]
  %s4 = sld [smem:[#allocation0]]
  $region45: #{tpu_custom_call.1} parent=0
    _
  %s6 = ssub.s32 1, %s4
  %s7 = scalar_select 0, %s6, %s4
  loop: start=0, step=1, limit=4
  $region2: #{tpu_custom_call.1} parent=0 // loop_pre_header
    _
  $region3: #{tpu_custom_call.1} parent=0 // loop_header
    %s9 = sphi 0, %s13
    %p10 = scmp.ge.s32.totalorder %s9, 4
    %s19 = sphi 0, %s21
    %s22 = sphi 0, %s19
    %s23 = sphi 0, %s22
    %s39 = sphi 0, %s23
    %s45 = sphi 0, %s47
    %s48 = sphi 0, %s45
    %s49 = sphi 0, %s48
    %s65 = sphi 0, %s49
    %s71 = sphi 0, %s73
    %s74 = sphi 0, %s71
    %s75 = sphi 0, %s74
    %s91 = sphi 0, %s75
    %s97 = sphi 0, %s99
    %s100 = sphi 0, %s97
    %s101 = sphi 0, %s100
    %s117 = sphi 0, %s101
  $region4: #{tpu_custom_call.1} parent=0 // loop_header_branch
    %12 = sbr.rel (%p10) target = $region8
  $region5: #{tpu_custom_call.1} parent=0 // loop_body
    %s14 = ssub.s32 %s9, 1
    %s15 = ssub.s32 %s9, 2
    %s16 = sadd.s32 %s9, 1
    %s17 = ssub.s32 %s9, %s16
    %p18 = scmp.eq.s32.totalorder %s17, 0
    %s20 = sadd.s32 %s19, 1
    %s21 = scalar_select %p18, %s19, %s20
    %p24 = pneg %p18
    %p25 = scmp.eq.s32.totalorder %s9, 1
    %p26 = por %p24, %p25
    %p27 = scmp.ne.s32.totalorder %s19, %s22
    %p28 = scmp.eq.s32.totalorder %s9, 0
    %p29 = por %p27, %p28
    %p30 = scmp.ne.s32.totalorder %s19, %s22
    %p31 = scmp.eq.s32.totalorder %s14, 1
    %p32 = por %p30, %p31
    %p33 = scmp.ne.s32.totalorder %s22, %s23
    %p34 = scmp.eq.s32.totalorder %s14, 0
    %p35 = por %p33, %p34
    %p36 = scmp.ne.s32.totalorder %s22, %s23
    %p37 = scmp.eq.s32.totalorder %s15, 1
    %p38 = por %p36, %p37
    %p40 = scmp.ne.s32.totalorder %s23, %s39
    %p41 = scmp.eq.s32.totalorder %s15, 0
    %p42 = por %p40, %p41
    %s43 = ssub.s32 %s9, %s16
    %p44 = scmp.eq.s32.totalorder %s43, 0
    %s46 = sadd.s32 %s45, 1
    %s47 = scalar_select %p44, %s45, %s46
    %p50 = pneg %p44
    %p51 = scmp.eq.s32.totalorder %s9, 1
    %p52 = por %p50, %p51
    %p53 = scmp.ne.s32.totalorder %s45, %s48
    %p54 = scmp.eq.s32.totalorder %s9, 0
    %p55 = por %p53, %p54
    %p56 = scmp.ne.s32.totalorder %s45, %s48
    %p57 = scmp.eq.s32.totalorder %s14, 1
    %p58 = por %p56, %p57
    %p59 = scmp.ne.s32.totalorder %s48, %s49
    %p60 = scmp.eq.s32.totalorder %s14, 0
    %p61 = por %p59, %p60
    %p62 = scmp.ne.s32.totalorder %s48, %s49
    %p63 = scmp.eq.s32.totalorder %s15, 1
    %p64 = por %p62, %p63
    %p66 = scmp.ne.s32.totalorder %s49, %s65
    %p67 = scmp.eq.s32.totalorder %s15, 0
    %p68 = por %p66, %p67
    %s69 = ssub.s32 %s9, %s16
    %p70 = scmp.eq.s32.totalorder %s69, 0
    %s72 = sadd.s32 %s71, 1
    %s73 = scalar_select %p70, %s71, %s72
    %p76 = pneg %p70
    %p77 = scmp.eq.s32.totalorder %s9, 1
    %p78 = por %p76, %p77
    %p79 = scmp.ne.s32.totalorder %s71, %s74
    %p80 = scmp.eq.s32.totalorder %s9, 0
    %p81 = por %p79, %p80
    %p82 = scmp.ne.s32.totalorder %s71, %s74
    %p83 = scmp.eq.s32.totalorder %s14, 1
    %p84 = por %p82, %p83
    %p85 = scmp.ne.s32.totalorder %s74, %s75
    %p86 = scmp.eq.s32.totalorder %s14, 0
    %p87 = por %p85, %p86
    %p88 = scmp.ne.s32.totalorder %s74, %s75
    %p89 = scmp.eq.s32.totalorder %s15, 1
    %p90 = por %p88, %p89
    %p92 = scmp.ne.s32.totalorder %s75, %s91
    %p93 = scmp.eq.s32.totalorder %s15, 0
    %p94 = por %p92, %p93
    %s95 = ssub.s32 %s9, %s16
    %p96 = scmp.eq.s32.totalorder %s95, 0
    %s98 = sadd.s32 %s97, 1
    %s99 = scalar_select %p96, %s97, %s98
    %p102 = pneg %p96
    %p103 = scmp.eq.s32.totalorder %s9, 1
    %p104 = por %p102, %p103
    %p105 = scmp.ne.s32.totalorder %s97, %s100
    %p106 = scmp.eq.s32.totalorder %s9, 0
    %p107 = por %p105, %p106
    %p108 = scmp.ne.s32.totalorder %s97, %s100
    %p109 = scmp.eq.s32.totalorder %s14, 1
    %p110 = por %p108, %p109
    %p111 = scmp.ne.s32.totalorder %s100, %s101
    %p112 = scmp.eq.s32.totalorder %s14, 0
    %p113 = por %p111, %p112
    %p114 = scmp.ne.s32.totalorder %s100, %s101
    %p115 = scmp.eq.s32.totalorder %s15, 1
    %p116 = por %p114, %p115
    %p118 = scmp.ne.s32.totalorder %s101, %s117
    %p119 = scmp.eq.s32.totalorder %s15, 0
    %p120 = por %p118, %p119
    %p121 = scmp.le.s32.totalorder 1, %s9
    %p122 = scmp.lt.s32.totalorder %s9, 3
    %p123 = pnand %p121, %p122
    %p124 = pneg %p123
    // Predicated region
    $region9: #{tpu_custom_call.1} parent=5 // pred_check
      _
    $region10: #{tpu_custom_call.1} parent=5 // pred_check_branch
      %126 = sbr.rel (%p123) target = $region12
    $region11: #{tpu_custom_call.1} parent=5 // pred_region
      %s127 = ssub.s32 %s9, 1
    $region12: #{tpu_custom_call.1} parent=5 // pred_fallthru
      _
    %p128 = scmp.lt.s32.totalorder %s9, 2
    // Predicated region
    $region13: #{tpu_custom_call.1} parent=5 // pred_check
      %p129 = pneg %p128
    $region14: #{tpu_custom_call.1} parent=5 // pred_check_branch
      %131 = sbr.rel (%p129) target = $region16
    $region15: #{tpu_custom_call.1} parent=5 // pred_region
      // Predicated region
      $region17: #{tpu_custom_call.1} parent=15 // pred_check
        %p132 = pneg %p29
      $region18: #{tpu_custom_call.1} parent=15 // pred_check_branch
        %134 = sbr.rel (%p132) target = $region20
      $region19: #{tpu_custom_call.1} parent=15 // pred_region
        %p135 = scmp.lt.s32.totalorder %s9, 1
        %s136 = scalar_select %p135, %s9, 1
        %s137 = smul.addr %s136, 8
        %s138 = scalar_lea.vmem %s0, %s137
      $region20: #{tpu_custom_call.1} parent=15 // pred_fallthru
        _
      // Predicated region
      $region21: #{tpu_custom_call.1} parent=15 // pred_check
        %p139 = pneg %p55
      $region22: #{tpu_custom_call.1} parent=15 // pred_check_branch
        %141 = sbr.rel (%p139) target = $region24
      $region23: #{tpu_custom_call.1} parent=15 // pred_region
        %p142 = scmp.lt.s32.totalorder %s9, 1
        %s143 = scalar_select %p142, %s9, 1
        %s144 = smul.addr %s143, 8
        %s145 = scalar_lea.vmem %s1, %s144
      $region24: #{tpu_custom_call.1} parent=15 // pred_fallthru
        _
      // Predicated region
      $region25: #{tpu_custom_call.1} parent=15 // pred_check
        %p146 = pneg %p81
      $region26: #{tpu_custom_call.1} parent=15 // pred_check_branch
        %148 = sbr.rel (%p146) target = $region28
      $region27: #{tpu_custom_call.1} parent=15 // pred_region
        %p149 = scmp.lt.s32.totalorder %s9, 1
        %s150 = scalar_select %p149, %s9, 1
        %s151 = smul.addr %s150, 8
        %s152 = scalar_lea.vmem %s2, %s151
      $region28: #{tpu_custom_call.1} parent=15 // pred_fallthru
        _
    $region16: #{tpu_custom_call.1} parent=5 // pred_fallthru
      _
    %p153 = scmp.le.s32.totalorder 1, %s9
    %p154 = scmp.lt.s32.totalorder %s9, 3
    %p155 = pnand %p153, %p154
    %p156 = pneg %p155
    // Predicated region
    $region29: #{tpu_custom_call.1} parent=5 // pred_check
      _
    $region30: #{tpu_custom_call.1} parent=5 // pred_check_branch
      %158 = sbr.rel (%p155) target = $region32
    $region31: #{tpu_custom_call.1} parent=5 // pred_region
      %s159 = ssub.s32 %s9, 1
      %p160 = scmp.lt.s32.totalorder %s14, 1
      %s161 = scalar_select %p160, %s14, 1
      %s162 = smul.addr %s161, 8
      %s163 = scalar_lea.vmem %s0, %s162
      %p164 = pneg %p35
      %p165 = pneg %p32
      %p166 = scmp.lt.s32.totalorder %s14, 1
      %s167 = scalar_select %p166, %s14, 1
      %s168 = smul.addr %s167, 8
      %s169 = scalar_lea.vmem %s1, %s168
      %p170 = pneg %p61
      %p171 = pneg %p58
      %p172 = scmp.lt.s32.totalorder %s14, 1
      %s173 = scalar_select %p172, %s14, 1
      %s174 = smul.addr %s173, 8
      %s175 = scalar_lea.vmem %s2, %s174
      %p176 = pneg %p87
      %p177 = pneg %p84
      %p178 = pneg %p113
      %p179 = pneg %p110
      %p180 = scmp.lt.s32.totalorder %s14, 1
      %s181 = scalar_select %p180, %s14, 1
      %s182 = smul.addr %s181, 8
      %s183 = scalar_lea.vmem %s3, %s182
      %p184 = scmp.lt.s32.totalorder %s14, 1
      %s185 = scalar_select %p184, %s14, 1
      %s186 = smul.addr %s185, 8
      %s187 = scalar_lea.vmem %s0, %s186
      %p188 = scmp.lt.s32.totalorder %s14, 1
      %s189 = scalar_select %p188, %s14, 1
      %s190 = smul.addr %s189, 8
      %s191 = scalar_lea.vmem %s1, %s190
      %p192 = scmp.lt.s32.totalorder %s14, 1
      %s193 = scalar_select %p192, %s14, 1
      %s194 = smul.addr %s193, 8
      %s195 = scalar_lea.vmem %s2, %s194
      %p196 = scmp.lt.s32.totalorder %s14, 1
      %s197 = scalar_select %p196, %s14, 1
      %s198 = smul.addr %s197, 8
      %s199 = scalar_lea.vmem %s3, %s198
      %v200 = vlaneseq
      %v201 = vand.u32 %v200, 127
      %v202 = vld [vmem:[%s187] sm:$0xff]
      %v203 = vld [vmem:[%s191] sm:$0xff]
      %v204 = vld [vmem:[%s195] sm:$0xff]
      %205 = vset.pattern.permute.xlu0 0
      %206 = vperm.xlu0 %205, %v203
      %v207 = vpop.permute.xlu0 %206
      %vm208 = vcmp.eq.s32.totalorder %v207, %v201
      %v209 = vsel %vm208, 1, 0
      %v210 = vcvt.s32.f32 %v209
      %vm211 = vcmp.eq.s32.totalorder %v201, 0
      %v212 = vsel %vm211, 1, 0
      %vm213 = vcmp.eq.s32.totalorder %v212, 1
      %215 = vset.pattern.permute.xlu0 0
      %216 = vperm.xlu0 %215, %v204
      %v217 = vpop.permute.xlu0 %216
      %v219 = vsel %vm213, %v217, 1.0
      %v220 = vmul.f32 %v210, %v219
      %221 = vxpose.xlu0.b32.start [1/16] %v220, 128
      %222 = vxpose.xlu0.b32.cont [2/16] 0.0, 128
      %223 = vxpose.xlu0.b32.cont [3/16] 0.0, 128
      %224 = vxpose.xlu0.b32.cont [4/16] 0.0, 128
      %225 = vxpose.xlu0.b32.cont [5/16] 0.0, 128
      %226 = vxpose.xlu0.b32.cont [6/16] 0.0, 128
      %227 = vxpose.xlu0.b32.cont [7/16] 0.0, 128
      %228 = vxpose.xlu0.b32.cont [8/16] 0.0, 128
      %229 = vxpose.xlu0.b32.cont [9/16] 0.0, 128
      %230 = vxpose.xlu0.b32.cont [10/16] 0.0, 128
      %231 = vxpose.xlu0.b32.cont [11/16] 0.0, 128
      %232 = vxpose.xlu0.b32.cont [12/16] 0.0, 128
      %233 = vxpose.xlu0.b32.cont [13/16] 0.0, 128
      %234 = vxpose.xlu0.b32.cont [14/16] 0.0, 128
      %235 = vxpose.xlu0.b32.cont [15/16] 0.0, 128
      %236 = vxpose.xlu0.b32.end [16/16] 0.0, 128
      %v237 = vpop.trf.xlu0
      %v238 = vpop.trf.xlu0
      %v239 = vpop.trf.xlu0
      %v240 = vpop.trf.xlu0
      %v241 = vpop.trf.xlu0
      %v242 = vpop.trf.xlu0
      %v243 = vpop.trf.xlu0
      %v244 = vpop.trf.xlu0
      %v245 = vpop.trf.xlu0
      %v246 = vpop.trf.xlu0
      %v247 = vpop.trf.xlu0
      %v248 = vpop.trf.xlu0
      %v249 = vpop.trf.xlu0
      %v250 = vpop.trf.xlu0
      %v251 = vpop.trf.xlu0
      %v252 = vpop.trf.xlu0
      %vm253 = vcmask 64512
      %v255 = vsel %vm253, %v237, 0
      %257 = vmatprep.subr.mxu0 0.0
      %258 = vmatpush1.msra.mxu0 %v202
      %259 = vmatprep.subr.mxu0 0.0
      %260 = vmatpush1.msra.mxu0 0.0
      %261 = vmatprep.subr.mxu0 0.0
      %262 = vmatpush1.msra.mxu0 0.0
      %263 = vmatprep.subr.mxu0 0.0
      %264 = vmatpush1.msra.mxu0 0.0
      %265 = vmatprep.subr.mxu0 0.0
      %266 = vmatpush1.msra.mxu0 0.0
      %267 = vmatprep.subr.mxu0 0.0
      %268 = vmatpush1.msra.mxu0 0.0
      %269 = vmatprep.subr.mxu0 0.0
      %270 = vmatpush1.msra.mxu0 0.0
      %271 = vmatprep.subr.mxu0 0.0
      %272 = vmatpush1.msra.mxu0 0.0
      %273 = vmatprep.subr.mxu0 0.0
      %274 = vmatpush1.msra.mxu0 0.0
      %275 = vmatprep.subr.mxu0 0.0
      %276 = vmatpush1.msra.mxu0 0.0
      %277 = vmatprep.subr.mxu0 0.0
      %278 = vmatpush1.msra.mxu0 0.0
      %279 = vmatprep.subr.mxu0 0.0
      %280 = vmatpush1.msra.mxu0 0.0
      %281 = vmatprep.subr.mxu0 0.0
      %282 = vmatpush1.msra.mxu0 0.0
      %283 = vmatprep.subr.mxu0 0.0
      %284 = vmatpush1.msra.mxu0 0.0
      %285 = vmatprep.subr.mxu0 0.0
      %286 = vmatpush1.msra.mxu0 0.0
      %287 = vmatprep.subr.mxu0 0.0
      %288 = vmatpush1.msra.mxu0 0.0
      %289 = vmatprep.subr.mxu0 0.0
      %290 = vmatpush1.msra.mxu0 0.0
      %291 = vmatprep.subr.mxu0 0.0
      %292 = vmatpush1.msra.mxu0 0.0
      %293 = vmatprep.subr.mxu0 0.0
      %294 = vmatpush1.msra.mxu0 0.0
      %295 = vmatprep.subr.mxu0 0.0
      %296 = vmatpush1.msra.mxu0 0.0
      %297 = vmatprep.subr.mxu0 0.0
      %298 = vmatpush1.msra.mxu0 0.0
      %299 = vmatprep.subr.mxu0 0.0
      %300 = vmatpush1.msra.mxu0 0.0
      %301 = vmatprep.subr.mxu0 0.0
      %302 = vmatpush1.msra.mxu0 0.0
      %303 = vmatprep.subr.mxu0 0.0
      %304 = vmatpush1.msra.mxu0 0.0
      %305 = vmatprep.subr.mxu0 0.0
      %306 = vmatpush1.msra.mxu0 0.0
      %307 = vmatprep.subr.mxu0 0.0
      %308 = vmatpush1.msra.mxu0 0.0
      %309 = vmatprep.subr.mxu0 0.0
      %310 = vmatpush1.msra.mxu0 0.0
      %311 = vmatprep.subr.mxu0 0.0
      %312 = vmatpush1.msra.mxu0 0.0
      %313 = vmatprep.subr.mxu0 0.0
      %314 = vmatpush1.msra.mxu0 0.0
      %315 = vmatprep.subr.mxu0 0.0
      %316 = vmatpush1.msra.mxu0 0.0
      %317 = vmatprep.subr.mxu0 0.0
      %318 = vmatpush1.msra.mxu0 0.0
      %319 = vmatprep.subr.mxu0 0.0
      %320 = vmatpush1.msra.mxu0 0.0
      %321 = vmatprep.mubr.f32.mxu0 0.0
      %322 = vmatmul.mubr.f32.gmra.mrb[0].mxu0 %v255
      %v323 = vpop.f32.mrb[0].mxu0
      %v324 = vadd.f32 0.0, %v323
      %v325 = vpop.f32.mrb[0].mxu0
      %326 = vdwg.mxu0
      %vm327 = vcmask 39936
      %v328 = vsel %vm327, %v220, 0.0
      %v329 = vrot.slane %v328, 4
      %v330 = vadd.f32 %v328, %v329
      %v331 = vrot.slane %v330, 2
      %v332 = vadd.f32 %v330, %v331
      %v333 = vrot.slane %v332, 1
      %v334 = vadd.f32 %v332, %v333
      %335 = vxpose.xlu0.b32.start [1/16] %v334, 128
      %336 = vxpose.xlu0.b32.cont [2/16] 0.0, 128
      %337 = vxpose.xlu0.b32.cont [3/16] 0.0, 128
      %338 = vxpose.xlu0.b32.cont [4/16] 0.0, 128
      %339 = vxpose.xlu0.b32.cont [5/16] 0.0, 128
      %340 = vxpose.xlu0.b32.cont [6/16] 0.0, 128
      %341 = vxpose.xlu0.b32.cont [7/16] 0.0, 128
      %342 = vxpose.xlu0.b32.cont [8/16] 0.0, 128
      %343 = vxpose.xlu0.b32.cont [9/16] 0.0, 128
      %344 = vxpose.xlu0.b32.cont [10/16] 0.0, 128
      %345 = vxpose.xlu0.b32.cont [11/16] 0.0, 128
      %346 = vxpose.xlu0.b32.cont [12/16] 0.0, 128
      %347 = vxpose.xlu0.b32.cont [13/16] 0.0, 128
      %348 = vxpose.xlu0.b32.cont [14/16] 0.0, 128
      %349 = vxpose.xlu0.b32.cont [15/16] 0.0, 128
      %350 = vxpose.xlu0.b32.end [16/16] 0.0, 128
      %v351 = vpop.trf.xlu0
      %v352 = vpop.trf.xlu0
      %v353 = vpop.trf.xlu0
      %v354 = vpop.trf.xlu0
      %v355 = vpop.trf.xlu0
      %v356 = vpop.trf.xlu0
      %v357 = vpop.trf.xlu0
      %v358 = vpop.trf.xlu0
      %v359 = vpop.trf.xlu0
      %v360 = vpop.trf.xlu0
      %v361 = vpop.trf.xlu0
      %v362 = vpop.trf.xlu0
      %v363 = vpop.trf.xlu0
      %v364 = vpop.trf.xlu0
      %v365 = vpop.trf.xlu0
      %v366 = vpop.trf.xlu0
      %vm367 = vcmp.gt.f32.partialorder %v351, 0.0
      %v368 = vsel %vm367, %v351, 1.0
      %370 = vset.pattern.permute.xlu0 0
      %371 = vperm.xlu0 %370, %v368
      %v372 = vpop.permute.xlu0 %371
      %v374 = vrcp.pop %v372
      %v375 = vmul.f32 %v324, %v374
      %v376 = vsel %vm367, 1, 0
      %377 = vset.pattern.permute.xlu0 0
      %378 = vperm.xlu0 %377, %v376
      %v379 = vpop.permute.xlu0 %378
      %vm380 = vcmp.eq.s32.totalorder %v379, 1
      %v381 = vsel %vm380, %v375, 0.0
      %v382 = vadd.f32 %v381, 0.0
      %vm383 = vcmask 258048
      %384 = vst.msk [vmem:[%s199] sm:$0x1f] %vm383, %v382
      %p385 = scmp.lt.s32.totalorder %s14, 1
      %s386 = scalar_select %p385, %s14, 1
      %s387 = smul.addr %s386, 8
      %s388 = scalar_lea.vmem %s3, %s387
      // Predicated region
      $region33: #{tpu_custom_call.1} parent=31 // pred_check
        %p389 = pneg %p110
      $region34: #{tpu_custom_call.1} parent=31 // pred_check_branch
        %391 = sbr.rel (%p389) target = $region36
      $region35: #{tpu_custom_call.1} parent=31 // pred_region
        _
      $region36: #{tpu_custom_call.1} parent=31 // pred_fallthru
        _
    $region32: #{tpu_custom_call.1} parent=5 // pred_fallthru
      _
    %p392 = scmp.le.s32.totalorder 2, %s9
    // Predicated region
    $region37: #{tpu_custom_call.1} parent=5 // pred_check
      %p393 = pneg %p392
    $region38: #{tpu_custom_call.1} parent=5 // pred_check_branch
      %395 = sbr.rel (%p393) target = $region40
    $region39: #{tpu_custom_call.1} parent=5 // pred_region
      %s396 = ssub.s32 %s9, 2
      // Predicated region
      $region41: #{tpu_custom_call.1} parent=39 // pred_check
        %p397 = pneg %p116
      $region42: #{tpu_custom_call.1} parent=39 // pred_check_branch
        %399 = sbr.rel (%p397) target = $region44
      $region43: #{tpu_custom_call.1} parent=39 // pred_region
        %p400 = scmp.lt.s32.totalorder %s15, 1
        %s401 = scalar_select %p400, %s15, 1
        %s402 = smul.addr %s401, 8
        %s403 = scalar_lea.vmem %s3, %s402
      $region44: #{tpu_custom_call.1} parent=39 // pred_fallthru
        _
    $region40: #{tpu_custom_call.1} parent=5 // pred_fallthru
      _
  $region6: #{tpu_custom_call.1} parent=0 // loop_footer
    %s13 = sadd.s32 1, %s9
  $region7: #{tpu_custom_call.1} parent=0 // loop_footer_branch
    %8 = sbr.rel target = $region3
  $region8: #{tpu_custom_call.1} parent=0 // loop_exit
    _

</llo_original>
